<compile_context>
chip_gen: v5e
topology: v5e:2x2
jax: 0.10.0
libtpu: 0.0.40
codegen_flags: <defaults>
</compile_context>

<pallas_src>
import math
import functools

import jax
import jax.numpy as jnp
from jax.experimental import pallas as pl
from jax.experimental.pallas import tpu as pltpu


def _temporal_attention_kernel(q_ref, k_ref, v_ref, mask_ref, res_ref,
                               ctx_ref, scores_ref, *, inv_sqrt_dk):
    # Per grid step (C = chunk of batch*heads):
    #   q_ref/k_ref: (C, T, d_k)   v_ref: (C, T, d_v)
    #   mask_ref/res_ref/scores_ref: (C, T, T)   ctx_ref: (C, T, d_v)
    q = q_ref[...]
    k = k_ref[...]
    v = v_ref[...]

    # Batched NT matmul straight on the MXU (no explicit K transpose),
    # operands in input dtype, f32 accumulation.
    s = jax.lax.dot_general(
        q, k,
        dimension_numbers=(((2,), (2,)), ((0,), (0,))),
        preferred_element_type=jnp.float32)
    s = s * jnp.float32(inv_sqrt_dk) + res_ref[...].astype(jnp.float32)

    # masked_fill_(attn_mask, -1e9); returned scores carry the fill (torch).
    s = jnp.where(mask_ref[...] != 0, jnp.float32(-1000000000.0), s)
    # Write scores early: the output-tile DMA overlaps the remaining compute.
    scores_ref[...] = s.astype(scores_ref.dtype)

    # Numerically-stable softmax over the key/time axis.
    m = jnp.max(s, axis=-1, keepdims=True)              # XLU reduce
    e = jnp.exp(s - m)                                  # EUP
    denom = jnp.sum(e, axis=-1, keepdims=True)          # XLU reduce
    attn = e * pl.reciprocal(denom, approx=True)        # EUP vrcp (free slot)

    # context = attn @ V (batched), probs cast to V's dtype for the MXU.
    ctx = jax.lax.dot_general(
        attn.astype(v.dtype), v,
        dimension_numbers=(((2,), (1,)), ((0,), (0,))),
        preferred_element_type=jnp.float32)
    ctx_ref[...] = ctx.astype(ctx_ref.dtype)


def _pick_bh_chunk(bh, t, dk, dv, in_bytes, budget_bytes=10 * 1024 * 1024):
    """Largest divisor of bh whose double-buffered working set fits the budget,
    keeping >=2 grid steps (megacore / v7x two-TC sharding) when possible."""
    per_head = 2 * (                       # x2: pipeline double-buffering
        (2 * t * dk + t * dv) * in_bytes   # Q, K, V
        + t * t * 1                        # mask (int8)
        + t * t * in_bytes                 # res_att
        + t * dv * in_bytes                # context out
        + t * t * 4)                       # scores out (f32)
    cap = max(1, budget_bytes // max(per_head, 1))
    cap = min(cap, bh // 2 if bh >= 2 else 1)
    cap = max(cap, 1)
    for c in range(cap, 0, -1):
        if bh % c == 0:
            return c
    return 1


def temporal_attention(Q, K, V, attn_mask, res_att, d_k):
    B, H, T, dk = Q.shape
    dv = V.shape[-1]
    BH = B * H

    if attn_mask is None:
        attn_mask = jnp.zeros((B, H, T, T), dtype=jnp.int8)

    # Fold batch and heads into one leading axis (free reshapes) so each grid
    # step processes a fat chunk of heads.
    q2 = Q.reshape(BH, T, dk)
    k2 = K.reshape(BH, T, dk)
    v2 = V.reshape(BH, T, dv)
    mask2 = attn_mask.reshape(BH, T, T).astype(jnp.int8)   # 1-byte mask stream
    res2 = res_att.reshape(BH, T, T)

    in_bytes = max(jnp.dtype(Q.dtype).itemsize,
                   jnp.dtype(res_att.dtype).itemsize)
    chunk = _pick_bh_chunk(BH, T, dk, dv, in_bytes)
    num_steps = BH // chunk

    kernel = functools.partial(_temporal_attention_kernel,
                               inv_sqrt_dk=1.0 / math.sqrt(d_k))

    def spec(last):
        # Last two block dims equal the full array dims -> (8,128) rule OK.
        return pl.BlockSpec((chunk, T, last), lambda i: (i, 0, 0))

    context, scores = pl.pallas_call(
        kernel,
        out_shape=(
            jax.ShapeDtypeStruct((BH, T, dv), Q.dtype),
            jax.ShapeDtypeStruct((BH, T, T), jnp.float32),
        ),
        grid_spec=pltpu.PrefetchScalarGridSpec(
            num_scalar_prefetch=0,
            grid=(num_steps,),
            in_specs=[spec(dk), spec(dk), spec(dv), spec(T), spec(T)],
            out_specs=[spec(dv), spec(T)],
        ),
        compiler_params=pltpu.CompilerParams(
            dimension_semantics=("parallel",),
            vmem_limit_bytes=32 * 1024 * 1024),
    )(q2, k2, v2, mask2, res2)

    return context.reshape(B, H, T, dv), scores.reshape(B, H, T, T)


def _reference(Q, K, V, attn_mask, res_att, d_k):
    scores = jnp.einsum("bhtd,bhsd->bhts", Q, K) / math.sqrt(d_k) + res_att
    scores = jnp.where(attn_mask, -1000000000.0, scores)
    attn = jax.nn.softmax(scores, axis=3)
    context = jnp.einsum("bhts,bhsd->bhtd", attn, V)
    return context, scores


if __name__ == "__main__":
    # Small shapes consistent with the module: B=2, num_of_d=4 heads, T=8, d_k=32.
    B, H, T, d_k, d_v = 2, 4, 8, 32, 32

    key = jax.random.PRNGKey(0)
    kq, kk, kv, kr, km = jax.random.split(key, 5)
    Q = jax.random.normal(kq, (B, H, T, d_k), dtype=jnp.float32)
    K = jax.random.normal(kk, (B, H, T, d_k), dtype=jnp.float32)
    V = jax.random.normal(kv, (B, H, T, d_v), dtype=jnp.float32)
    res_att = jax.random.normal(kr, (B, H, T, T), dtype=jnp.float32)
    attn_mask = jax.random.bernoulli(km, p=0.2, shape=(B, H, T, T))

    context, scores = temporal_attention(Q, K, V, attn_mask, res_att, d_k)
    context = jax.block_until_ready(context)
    scores = jax.block_until_ready(scores)

    # Sanity check against a pure-JAX reference of the PyTorch forward.
    ctx_ref, sc_ref = _reference(Q, K, V, attn_mask, res_att, d_k)
    assert jnp.allclose(scores, sc_ref, atol=1e-3, rtol=1e-3), "scores mismatch"
    # approx reciprocal in the softmax normalization -> slightly looser tol.
    assert jnp.allclose(context, ctx_ref, atol=1e-2, rtol=1e-2), "context mismatch"

    print("KERNEL_OK")
</pallas_src>

<mosaic_0001>
module attributes {stable_mosaic.version = 11 : i64} {
  func.func @_temporal_attention_kernel(%arg0: i32, %arg1: memref<4x8x32xf32, #tpu.memory_space<vmem>>, %arg2: memref<4x8x32xf32, #tpu.memory_space<vmem>>, %arg3: memref<4x8x32xf32, #tpu.memory_space<vmem>>, %arg4: memref<4x8x8xi8, #tpu.memory_space<vmem>>, %arg5: memref<4x8x8xf32, #tpu.memory_space<vmem>>, %arg6: memref<4x8x32xf32, #tpu.memory_space<vmem>>, %arg7: memref<4x8x8xf32, #tpu.memory_space<vmem>>) attributes {dimension_semantics = [#tpu.dimension_semantics<parallel>], iteration_bounds = array<i64: 2>, scalar_prefetch = 0 : i64, scratch_operands = 0 : i64, tpu.core_type = #tpu.core_type<tc>, window_params = [{transform_indices = @transform_0, window_bounds = array<i64: 4, 8, 32>}, {transform_indices = @transform_1, window_bounds = array<i64: 4, 8, 32>}, {transform_indices = @transform_2, window_bounds = array<i64: 4, 8, 32>}, {transform_indices = @transform_3, window_bounds = array<i64: 4, 8, 8>}, {transform_indices = @transform_4, window_bounds = array<i64: 4, 8, 8>}, {transform_indices = @transform_5, window_bounds = array<i64: 4, 8, 32>}, {transform_indices = @transform_6, window_bounds = array<i64: 4, 8, 8>}]} {
    %c0 = arith.constant 0 : index
    %c0_0 = arith.constant 0 : index
    %c0_1 = arith.constant 0 : index
    %0 = vector.load %arg1[%c0, %c0_0, %c0_1] : memref<4x8x32xf32, #tpu.memory_space<vmem>>, vector<4x8x32xf32>
    %c0_2 = arith.constant 0 : index
    %c0_3 = arith.constant 0 : index
    %c0_4 = arith.constant 0 : index
    %1 = vector.load %arg2[%c0_2, %c0_3, %c0_4] : memref<4x8x32xf32, #tpu.memory_space<vmem>>, vector<4x8x32xf32>
    %c0_5 = arith.constant 0 : index
    %c0_6 = arith.constant 0 : index
    %c0_7 = arith.constant 0 : index
    %2 = vector.load %arg3[%c0_5, %c0_6, %c0_7] : memref<4x8x32xf32, #tpu.memory_space<vmem>>, vector<4x8x32xf32>
    %cst = arith.constant dense<0.000000e+00> : vector<4x8x8xf32>
    %3 = tpu.matmul %0, %1, %cst {dimension_numbers = #tpu.dot_dimension_numbers<[2], [2], [1], [1], [0, 0, 0, 1, 1, 1], [0], [0]>} : vector<4x8x32xf32>, vector<4x8x32xf32>, vector<4x8x8xf32> -> vector<4x8x8xf32>
    %cst_8 = arith.constant 0.176776692 : f32
    %4 = vector.broadcast %cst_8 : f32 to vector<4x8x8xf32>
    %5 = arith.mulf %3, %4 : vector<4x8x8xf32>
    %c0_9 = arith.constant 0 : index
    %c0_10 = arith.constant 0 : index
    %c0_11 = arith.constant 0 : index
    %6 = vector.load %arg5[%c0_9, %c0_10, %c0_11] : memref<4x8x8xf32, #tpu.memory_space<vmem>>, vector<4x8x8xf32>
    %7 = arith.addf %5, %6 : vector<4x8x8xf32>
    %c0_12 = arith.constant 0 : index
    %c0_13 = arith.constant 0 : index
    %c0_14 = arith.constant 0 : index
    %8 = vector.load %arg4[%c0_12, %c0_13, %c0_14] : memref<4x8x8xi8, #tpu.memory_space<vmem>>, vector<4x8x8xi8>
    %c0_i8 = arith.constant 0 : i8
    %9 = vector.broadcast %c0_i8 : i8 to vector<4x8x8xi8>
    %10 = arith.cmpi ne, %8, %9 : vector<4x8x8xi8>
    %cst_15 = arith.constant -1.000000e+09 : f32
    %11 = vector.broadcast %cst_15 : f32 to vector<4x8x8xf32>
    %12 = arith.select %10, %11, %7 : vector<4x8x8xi1>, vector<4x8x8xf32>
    %c0_16 = arith.constant 0 : index
    %c0_17 = arith.constant 0 : index
    %c0_18 = arith.constant 0 : index
    %13 = vector.load %arg7[%c0_16, %c0_17, %c0_18] : memref<4x8x8xf32, #tpu.memory_space<vmem>>, vector<4x8x8xf32>
    tpu.vector_store %arg7[%c0_16, %c0_17, %c0_18], %12 {strides = array<i32>} : memref<4x8x8xf32, #tpu.memory_space<vmem>>, vector<4x8x8xf32>,
    %cst_19 = arith.constant dense<0xFF800000> : vector<4x8xf32>
    %14 = vector.multi_reduction <maximumf>, %12, %cst_19 [2] : vector<4x8x8xf32> to vector<4x8xf32>
    %15 = vector.shape_cast %14 : vector<4x8xf32> to vector<4x8x1xf32>
    %16 = vector.broadcast %15 : vector<4x8x1xf32> to vector<4x8x8xf32>
    %17 = arith.subf %12, %16 : vector<4x8x8xf32>
    %18 = math.exp %17 : vector<4x8x8xf32>
    %cst_20 = arith.constant dense<0.000000e+00> : vector<4x8xf32>
    %19 = vector.multi_reduction <add>, %18, %cst_20 [2] : vector<4x8x8xf32> to vector<4x8xf32>
    %20 = vector.shape_cast %19 : vector<4x8xf32> to vector<4x8x1xf32>
    %21 = tpu.reciprocal %20 {approx = true} : vector<4x8x1xf32> -> vector<4x8x1xf32>
    %22 = vector.broadcast %21 : vector<4x8x1xf32> to vector<4x8x8xf32>
    %23 = arith.mulf %18, %22 : vector<4x8x8xf32>
    %cst_21 = arith.constant dense<0.000000e+00> : vector<4x8x32xf32>
    %24 = tpu.matmul %23, %2, %cst_21 {dimension_numbers = #tpu.dot_dimension_numbers<[2], [1], [1], [2], [0, 0, 0, 1, 1, 2], [0], [0]>} : vector<4x8x8xf32>, vector<4x8x32xf32>, vector<4x8x32xf32> -> vector<4x8x32xf32>
    %c0_22 = arith.constant 0 : index
    %c0_23 = arith.constant 0 : index
    %c0_24 = arith.constant 0 : index
    %25 = vector.load %arg6[%c0_22, %c0_23, %c0_24] : memref<4x8x32xf32, #tpu.memory_space<vmem>>, vector<4x8x32xf32>
    tpu.vector_store %arg6[%c0_22, %c0_23, %c0_24], %24 {strides = array<i32>} : memref<4x8x32xf32, #tpu.memory_space<vmem>>, vector<4x8x32xf32>,
    return
  }
  func.func @transform_0(%arg0: i32) -> (i32, i32, i32) {
    %c0_i32 = arith.constant 0 : i32
    %c0_i32_0 = arith.constant 0 : i32
    %c0_i32_1 = arith.constant 0 : i32
    return %arg0, %c0_i32, %c0_i32_0 : i32, i32, i32
  }
  func.func @transform_1(%arg0: i32) -> (i32, i32, i32) {
    %c0_i32 = arith.constant 0 : i32
    %c0_i32_0 = arith.constant 0 : i32
    %c0_i32_1 = arith.constant 0 : i32
    return %arg0, %c0_i32, %c0_i32_0 : i32, i32, i32
  }
  func.func @transform_2(%arg0: i32) -> (i32, i32, i32) {
    %c0_i32 = arith.constant 0 : i32
    %c0_i32_0 = arith.constant 0 : i32
    %c0_i32_1 = arith.constant 0 : i32
    return %arg0, %c0_i32, %c0_i32_0 : i32, i32, i32
  }
  func.func @transform_3(%arg0: i32) -> (i32, i32, i32) {
    %c0_i32 = arith.constant 0 : i32
    %c0_i32_0 = arith.constant 0 : i32
    %c0_i32_1 = arith.constant 0 : i32
    return %arg0, %c0_i32, %c0_i32_0 : i32, i32, i32
  }
  func.func @transform_4(%arg0: i32) -> (i32, i32, i32) {
    %c0_i32 = arith.constant 0 : i32
    %c0_i32_0 = arith.constant 0 : i32
    %c0_i32_1 = arith.constant 0 : i32
    return %arg0, %c0_i32, %c0_i32_0 : i32, i32, i32
  }
  func.func @transform_5(%arg0: i32) -> (i32, i32, i32) {
    %c0_i32 = arith.constant 0 : i32
    %c0_i32_0 = arith.constant 0 : i32
    %c0_i32_1 = arith.constant 0 : i32
    return %arg0, %c0_i32, %c0_i32_0 : i32, i32, i32
  }
  func.func @transform_6(%arg0: i32) -> (i32, i32, i32) {
    %c0_i32 = arith.constant 0 : i32
    %c0_i32_0 = arith.constant 0 : i32
    %c0_i32_1 = arith.constant 0 : i32
    return %arg0, %c0_i32, %c0_i32_0 : i32, i32, i32
  }
}

</mosaic_0001>

<llo_original>
// kernel: tpu_custom_call.1
$region0: #{tpu_custom_call.1}
  #allocation0 [shape = 'u32[]', space=smem, size = 0x4, offset = 0x4, fixed_abs, tag = 'smem constant byte address 0x4 - core index']
  #allocation1 [shape = 'u32[72,128]{1,0:T(1,128)}', space=vmem, size = 0x9000, scoped, tag = 'internal scratch']
  %s0 = inlined_call_operand.hbm [shape: f32[8,8,32], index: 0, kind: input, shape index: {}]
  %s1 = inlined_call_operand.hbm [shape: f32[8,8,32], index: 1, kind: input, shape index: {}]
  %s2 = inlined_call_operand.hbm [shape: f32[8,8,32], index: 2, kind: input, shape index: {}]
  %s3 = inlined_call_operand.hbm [shape: s8[8,8,8], index: 3, kind: input, shape index: {}]
  %s4 = inlined_call_operand.hbm [shape: f32[8,8,8], index: 4, kind: input, shape index: {}]
  %s5 = inlined_call_operand.hbm [shape: f32[8,8,32], index: 5, kind: output, shape index: {0}]
  %s6 = inlined_call_operand.hbm [shape: f32[8,8,8], index: 6, kind: output, shape index: {1}]
  %7 = xla_tuple %s5, %s6
  %s8 = sld [smem:[#allocation0]]
  $region81: #{tpu_custom_call.1} parent=0
    _
  %s10 = ssub.s32 1, %s8
  %s11 = scalar_select 0, %s10, %s8
  $region1: #{tpu_custom_call.1} parent=0
    #allocation2 [shape = 'u8[32768]{0}', space=vmem, size = 0x8000, scoped, tag = 'input window, operand 0']
    #allocation3 [shape = 's32[2]{0}', space=sflag, size = 0x8, scoped, tag = 'scoped memory for tpu_custom_call.1']
    #allocation4 [shape = 's32[2]{0}', space=sflag, size = 0x8, scoped, tag = 'scoped memory for tpu_custom_call.1']
    #allocation5 [shape = 'u8[32768]{0}', space=vmem, size = 0x8000, scoped, tag = 'input window, operand 1']
    #allocation6 [shape = 's32[2]{0}', space=sflag, size = 0x8, scoped, tag = 'scoped memory for tpu_custom_call.1']
    #allocation7 [shape = 'u8[32768]{0}', space=vmem, size = 0x8000, scoped, tag = 'input window, operand 2']
    #allocation8 [shape = 'u8[8192]{0}', space=vmem, size = 0x2000, scoped, tag = 'input window, operand 3']
    #allocation9 [shape = 's32[2]{0}', space=sflag, size = 0x8, scoped, tag = 'scoped memory for tpu_custom_call.1']
    #allocation10 [shape = 'u8[32768]{0}', space=vmem, size = 0x8000, scoped, tag = 'input window, operand 4']
    #allocation11 [shape = 'u8[32768]{0}', space=vmem, size = 0x8000, scoped, tag = 'output window, operand 0']
    #allocation12 [shape = 'u8[32768]{0}', space=vmem, size = 0x8000, scoped, tag = 'output window, operand 1']
    #allocation13 [shape = 's32[2]{0}', space=sflag, size = 0x8, scoped, tag = 'scoped memory for tpu_custom_call.1']
    %12 = vsyncpa [#allocation3], 0
    %s13 = scalar_lea.sflag [#allocation3], 1
    %14 = vsyncpa %s13, 0
    %15 = vsyncpa [#allocation6], 0
    %s16 = scalar_lea.sflag [#allocation6], 1
    %17 = vsyncpa %s16, 0
    %18 = vsyncpa [#allocation9], 0
    %s19 = scalar_lea.sflag [#allocation9], 1
    %20 = vsyncpa %s19, 0
    %21 = vsyncpa [#allocation4], 0
    %s22 = scalar_lea.sflag [#allocation4], 1
    %23 = vsyncpa %s22, 0
    %24 = vsyncpa [#allocation13], 0
    %s25 = scalar_lea.sflag [#allocation13], 1
    %26 = vsyncpa %s25, 0
    loop: start=0, step=1, limit=4
    $region2: #{tpu_custom_call.1} parent=1 // loop_pre_header
      _
    $region3: #{tpu_custom_call.1} parent=1 // loop_header
      %s28 = sphi 0, %s32
      %p29 = scmp.ge.s32.totalorder %s28, 4
      %s38 = sphi 0, %s40
      %s41 = sphi 0, %s38
      %s42 = sphi 0, %s41
      %s58 = sphi 0, %s42
      %s64 = sphi 0, %s66
      %s67 = sphi 0, %s64
      %s68 = sphi 0, %s67
      %s84 = sphi 0, %s68
      %s90 = sphi 0, %s92
      %s93 = sphi 0, %s90
      %s94 = sphi 0, %s93
      %s110 = sphi 0, %s94
      %s116 = sphi 0, %s118
      %s119 = sphi 0, %s116
      %s120 = sphi 0, %s119
      %s136 = sphi 0, %s120
      %s142 = sphi 0, %s144
      %s145 = sphi 0, %s142
      %s146 = sphi 0, %s145
      %s162 = sphi 0, %s146
      %s168 = sphi 0, %s170
      %s171 = sphi 0, %s168
      %s172 = sphi 0, %s171
      %s188 = sphi 0, %s172
      %s194 = sphi 0, %s196
      %s197 = sphi 0, %s194
      %s198 = sphi 0, %s197
      %s214 = sphi 0, %s198
    $region4: #{tpu_custom_call.1} parent=1 // loop_header_branch
      %31 = sbr.rel (%p29) target = $region8
    $region5: #{tpu_custom_call.1} parent=1 // loop_body
      %s33 = ssub.s32 %s28, 1
      %s34 = ssub.s32 %s28, 2
      %s35 = sadd.s32 %s28, 1
      %s36 = ssub.s32 %s28, %s35
      %p37 = scmp.eq.s32.totalorder %s36, 0
      %s39 = sadd.s32 %s38, 1
      %s40 = scalar_select %p37, %s38, %s39
      %p43 = pneg %p37
      %p44 = scmp.eq.s32.totalorder %s28, 1
      %p45 = por %p43, %p44
      %p46 = scmp.ne.s32.totalorder %s38, %s41
      %p47 = scmp.eq.s32.totalorder %s28, 0
      %p48 = por %p46, %p47
      %p49 = scmp.ne.s32.totalorder %s38, %s41
      %p50 = scmp.eq.s32.totalorder %s33, 1
      %p51 = por %p49, %p50
      %p52 = scmp.ne.s32.totalorder %s41, %s42
      %p53 = scmp.eq.s32.totalorder %s33, 0
      %p54 = por %p52, %p53
      %p55 = scmp.ne.s32.totalorder %s41, %s42
      %p56 = scmp.eq.s32.totalorder %s34, 1
      %p57 = por %p55, %p56
      %p59 = scmp.ne.s32.totalorder %s42, %s58
      %p60 = scmp.eq.s32.totalorder %s34, 0
      %p61 = por %p59, %p60
      %s62 = ssub.s32 %s28, %s35
      %p63 = scmp.eq.s32.totalorder %s62, 0
      %s65 = sadd.s32 %s64, 1
      %s66 = scalar_select %p63, %s64, %s65
      %p69 = pneg %p63
      %p70 = scmp.eq.s32.totalorder %s28, 1
      %p71 = por %p69, %p70
      %p72 = scmp.ne.s32.totalorder %s64, %s67
      %p73 = scmp.eq.s32.totalorder %s28, 0
      %p74 = por %p72, %p73
      %p75 = scmp.ne.s32.totalorder %s64, %s67
      %p76 = scmp.eq.s32.totalorder %s33, 1
      %p77 = por %p75, %p76
      %p78 = scmp.ne.s32.totalorder %s67, %s68
      %p79 = scmp.eq.s32.totalorder %s33, 0
      %p80 = por %p78, %p79
      %p81 = scmp.ne.s32.totalorder %s67, %s68
      %p82 = scmp.eq.s32.totalorder %s34, 1
      %p83 = por %p81, %p82
      %p85 = scmp.ne.s32.totalorder %s68, %s84
      %p86 = scmp.eq.s32.totalorder %s34, 0
      %p87 = por %p85, %p86
      %s88 = ssub.s32 %s28, %s35
      %p89 = scmp.eq.s32.totalorder %s88, 0
      %s91 = sadd.s32 %s90, 1
      %s92 = scalar_select %p89, %s90, %s91
      %p95 = pneg %p89
      %p96 = scmp.eq.s32.totalorder %s28, 1
      %p97 = por %p95, %p96
      %p98 = scmp.ne.s32.totalorder %s90, %s93
      %p99 = scmp.eq.s32.totalorder %s28, 0
      %p100 = por %p98, %p99
      %p101 = scmp.ne.s32.totalorder %s90, %s93
      %p102 = scmp.eq.s32.totalorder %s33, 1
      %p103 = por %p101, %p102
      %p104 = scmp.ne.s32.totalorder %s93, %s94
      %p105 = scmp.eq.s32.totalorder %s33, 0
      %p106 = por %p104, %p105
      %p107 = scmp.ne.s32.totalorder %s93, %s94
      %p108 = scmp.eq.s32.totalorder %s34, 1
      %p109 = por %p107, %p108
      %p111 = scmp.ne.s32.totalorder %s94, %s110
      %p112 = scmp.eq.s32.totalorder %s34, 0
      %p113 = por %p111, %p112
      %s114 = ssub.s32 %s28, %s35
      %p115 = scmp.eq.s32.totalorder %s114, 0
      %s117 = sadd.s32 %s116, 1
      %s118 = scalar_select %p115, %s116, %s117
      %p121 = pneg %p115
      %p122 = scmp.eq.s32.totalorder %s28, 1
      %p123 = por %p121, %p122
      %p124 = scmp.ne.s32.totalorder %s116, %s119
      %p125 = scmp.eq.s32.totalorder %s28, 0
      %p126 = por %p124, %p125
      %p127 = scmp.ne.s32.totalorder %s116, %s119
      %p128 = scmp.eq.s32.totalorder %s33, 1
      %p129 = por %p127, %p128
      %p130 = scmp.ne.s32.totalorder %s119, %s120
      %p131 = scmp.eq.s32.totalorder %s33, 0
      %p132 = por %p130, %p131
      %p133 = scmp.ne.s32.totalorder %s119, %s120
      %p134 = scmp.eq.s32.totalorder %s34, 1
      %p135 = por %p133, %p134
      %p137 = scmp.ne.s32.totalorder %s120, %s136
      %p138 = scmp.eq.s32.totalorder %s34, 0
      %p139 = por %p137, %p138
      %s140 = ssub.s32 %s28, %s35
      %p141 = scmp.eq.s32.totalorder %s140, 0
      %s143 = sadd.s32 %s142, 1
      %s144 = scalar_select %p141, %s142, %s143
      %p147 = pneg %p141
      %p148 = scmp.eq.s32.totalorder %s28, 1
      %p149 = por %p147, %p148
      %p150 = scmp.ne.s32.totalorder %s142, %s145
      %p151 = scmp.eq.s32.totalorder %s28, 0
      %p152 = por %p150, %p151
      %p153 = scmp.ne.s32.totalorder %s142, %s145
      %p154 = scmp.eq.s32.totalorder %s33, 1
      %p155 = por %p153, %p154
      %p156 = scmp.ne.s32.totalorder %s145, %s146
      %p157 = scmp.eq.s32.totalorder %s33, 0
      %p158 = por %p156, %p157
      %p159 = scmp.ne.s32.totalorder %s145, %s146
      %p160 = scmp.eq.s32.totalorder %s34, 1
      %p161 = por %p159, %p160
      %p163 = scmp.ne.s32.totalorder %s146, %s162
      %p164 = scmp.eq.s32.totalorder %s34, 0
      %p165 = por %p163, %p164
      %s166 = ssub.s32 %s28, %s35
      %p167 = scmp.eq.s32.totalorder %s166, 0
      %s169 = sadd.s32 %s168, 1
      %s170 = scalar_select %p167, %s168, %s169
      %p173 = pneg %p167
      %p174 = scmp.eq.s32.totalorder %s28, 1
      %p175 = por %p173, %p174
      %p176 = scmp.ne.s32.totalorder %s168, %s171
      %p177 = scmp.eq.s32.totalorder %s28, 0
      %p178 = por %p176, %p177
      %p179 = scmp.ne.s32.totalorder %s168, %s171
      %p180 = scmp.eq.s32.totalorder %s33, 1
      %p181 = por %p179, %p180
      %p182 = scmp.ne.s32.totalorder %s171, %s172
      %p183 = scmp.eq.s32.totalorder %s33, 0
      %p184 = por %p182, %p183
      %p185 = scmp.ne.s32.totalorder %s171, %s172
      %p186 = scmp.eq.s32.totalorder %s34, 1
      %p187 = por %p185, %p186
      %p189 = scmp.ne.s32.totalorder %s172, %s188
      %p190 = scmp.eq.s32.totalorder %s34, 0
      %p191 = por %p189, %p190
      %s192 = ssub.s32 %s28, %s35
      %p193 = scmp.eq.s32.totalorder %s192, 0
      %s195 = sadd.s32 %s194, 1
      %s196 = scalar_select %p193, %s194, %s195
      %p199 = pneg %p193
      %p200 = scmp.eq.s32.totalorder %s28, 1
      %p201 = por %p199, %p200
      %p202 = scmp.ne.s32.totalorder %s194, %s197
      %p203 = scmp.eq.s32.totalorder %s28, 0
      %p204 = por %p202, %p203
      %p205 = scmp.ne.s32.totalorder %s194, %s197
      %p206 = scmp.eq.s32.totalorder %s33, 1
      %p207 = por %p205, %p206
      %p208 = scmp.ne.s32.totalorder %s197, %s198
      %p209 = scmp.eq.s32.totalorder %s33, 0
      %p210 = por %p208, %p209
      %p211 = scmp.ne.s32.totalorder %s197, %s198
      %p212 = scmp.eq.s32.totalorder %s34, 1
      %p213 = por %p211, %p212
      %p215 = scmp.ne.s32.totalorder %s198, %s214
      %p216 = scmp.eq.s32.totalorder %s34, 0
      %p217 = por %p215, %p216
      %p218 = scmp.le.s32.totalorder 1, %s28
      %p219 = scmp.lt.s32.totalorder %s28, 3
      %p220 = pnand %p218, %p219
      %p221 = pneg %p220
      // Predicated region
      $region9: #{tpu_custom_call.1} parent=5 // pred_check
        _
      $region10: #{tpu_custom_call.1} parent=5 // pred_check_branch
        %223 = sbr.rel (%p220) target = $region12
      $region11: #{tpu_custom_call.1} parent=5 // pred_region
        %s224 = ssub.s32 %s28, 1
      $region12: #{tpu_custom_call.1} parent=5 // pred_fallthru
        _
      %p225 = scmp.lt.s32.totalorder %s28, 2
      // Predicated region
      $region13: #{tpu_custom_call.1} parent=5 // pred_check
        %p226 = pneg %p225
      $region14: #{tpu_custom_call.1} parent=5 // pred_check_branch
        %228 = sbr.rel (%p226) target = $region16
      $region15: #{tpu_custom_call.1} parent=5 // pred_region
        // Predicated region
        $region17: #{tpu_custom_call.1} parent=15 // pred_check
          %p229 = pneg %p48
        $region18: #{tpu_custom_call.1} parent=15 // pred_check_branch
          %231 = sbr.rel (%p229) target = $region20
        $region19: #{tpu_custom_call.1} parent=15 // pred_region
          %s232 = sand.u32 %s38, 1
          %s233 = scalar_lea.sflag [#allocation3], %s232
          %s234 = sand.u32 %s38, 1
          %s235 = smul.addr %s234, 32
          %s236 = scalar_lea.vmem [#allocation2], %s235
          %s237 = smul.u32 4, %s28
          %239 = vsyncadd %s233, 0
          %s240 = smul.addr %s237, 8
          %s241 = scalar_lea.hbm %s0, %s240
          %s242 = sshll.u32 %s241, 4
          %s243 = int_to_ptr.hbm [resolvable:$true] %s242
          %s244 = sshll.u32 %s236, 4
          %s245 = int_to_ptr.vmem [resolvable:$true] %s244
          %250 = dma.hbm_to_vmem [thread:$0]  %s243, 512, %s245, %s233, 128, 128, 8
        $region20: #{tpu_custom_call.1} parent=15 // pred_fallthru
          _
        // Predicated region
        $region21: #{tpu_custom_call.1} parent=15 // pred_check
          %p251 = pneg %p74
        $region22: #{tpu_custom_call.1} parent=15 // pred_check_branch
          %253 = sbr.rel (%p251) target = $region24
        $region23: #{tpu_custom_call.1} parent=15 // pred_region
          %s254 = sand.u32 %s28, 1
          %s255 = scalar_lea.sflag [#allocation6], %s254
          %s256 = sand.u32 %s64, 1
          %s257 = smul.addr %s256, 32
          %s258 = scalar_lea.vmem [#allocation5], %s257
          %s259 = smul.u32 4, %s28
          %261 = vsyncadd %s255, 0
          %s262 = smul.addr %s259, 8
          %s263 = scalar_lea.hbm %s1, %s262
          %s264 = sshll.u32 %s263, 4
          %s265 = int_to_ptr.hbm [resolvable:$true] %s264
          %s266 = sshll.u32 %s258, 4
          %s267 = int_to_ptr.vmem [resolvable:$true] %s266
          %272 = dma.hbm_to_vmem [thread:$0]  %s265, 512, %s267, %s255, 128, 128, 8
        $region24: #{tpu_custom_call.1} parent=15 // pred_fallthru
          _
        // Predicated region
        $region25: #{tpu_custom_call.1} parent=15 // pred_check
          %p273 = pneg %p100
        $region26: #{tpu_custom_call.1} parent=15 // pred_check_branch
          %275 = sbr.rel (%p273) target = $region28
        $region27: #{tpu_custom_call.1} parent=15 // pred_region
          %s276 = sand.u32 %s28, 1
          %s277 = scalar_lea.sflag [#allocation6], %s276
          %s278 = sand.u32 %s90, 1
          %s279 = smul.addr %s278, 32
          %s280 = scalar_lea.vmem [#allocation7], %s279
          %s281 = smul.u32 4, %s28
          %283 = vsyncadd %s277, 0
          %s284 = smul.addr %s281, 8
          %s285 = scalar_lea.hbm %s2, %s284
          %s286 = sshll.u32 %s285, 4
          %s287 = int_to_ptr.hbm [resolvable:$true] %s286
          %s288 = sshll.u32 %s280, 4
          %s289 = int_to_ptr.vmem [resolvable:$true] %s288
          %294 = dma.hbm_to_vmem [thread:$0]  %s287, 512, %s289, %s277, 128, 128, 8
        $region28: #{tpu_custom_call.1} parent=15 // pred_fallthru
          _
        // Predicated region
        $region29: #{tpu_custom_call.1} parent=15 // pred_check
          %p295 = pneg %p126
        $region30: #{tpu_custom_call.1} parent=15 // pred_check_branch
          %297 = sbr.rel (%p295) target = $region32
        $region31: #{tpu_custom_call.1} parent=15 // pred_region
          %s298 = sand.u32 %s28, 1
          %s299 = scalar_lea.sflag [#allocation9], %s298
          %s300 = sand.u32 %s116, 1
          %s301 = smul.addr %s300, 8
          %s302 = scalar_lea.vmem [#allocation8], %s301
          %s303 = smul.u32 4, %s28
          %305 = vsyncadd %s299, 0
          %s306 = smul.addr %s303, 2
          %s307 = scalar_lea.hbm %s3, %s306
          %s308 = sshll.u32 %s307, 4
          %s309 = int_to_ptr.hbm [resolvable:$true] %s308
          %s310 = sshll.u32 %s302, 4
          %s311 = int_to_ptr.vmem [resolvable:$true] %s310
          %316 = dma.hbm_to_vmem [thread:$0]  %s309, 128, %s311, %s299, 32, 32, 2
        $region32: #{tpu_custom_call.1} parent=15 // pred_fallthru
          _
        // Predicated region
        $region33: #{tpu_custom_call.1} parent=15 // pred_check
          %p317 = pneg %p152
        $region34: #{tpu_custom_call.1} parent=15 // pred_check_branch
          %319 = sbr.rel (%p317) target = $region36
        $region35: #{tpu_custom_call.1} parent=15 // pred_region
          %s320 = sand.u32 %s28, 1
          %s321 = scalar_lea.sflag [#allocation9], %s320
          %s322 = sand.u32 %s142, 1
          %s323 = smul.addr %s322, 32
          %s324 = scalar_lea.vmem [#allocation10], %s323
          %s325 = smul.u32 4, %s28
          %327 = vsyncadd %s321, 0
          %s328 = smul.addr %s325, 8
          %s329 = scalar_lea.hbm %s4, %s328
          %s330 = sshll.u32 %s329, 4
          %s331 = int_to_ptr.hbm [resolvable:$true] %s330
          %s332 = sshll.u32 %s324, 4
          %s333 = int_to_ptr.vmem [resolvable:$true] %s332
          %338 = dma.hbm_to_vmem [thread:$0]  %s331, 512, %s333, %s321, 128, 128, 8
        $region36: #{tpu_custom_call.1} parent=15 // pred_fallthru
          _
      $region16: #{tpu_custom_call.1} parent=5 // pred_fallthru
        _
      %p339 = scmp.le.s32.totalorder 1, %s28
      %p340 = scmp.lt.s32.totalorder %s28, 3
      %p341 = pnand %p339, %p340
      %p342 = pneg %p341
      // Predicated region
      $region37: #{tpu_custom_call.1} parent=5 // pred_check
        _
      $region38: #{tpu_custom_call.1} parent=5 // pred_check_branch
        %344 = sbr.rel (%p341) target = $region40
      $region39: #{tpu_custom_call.1} parent=5 // pred_region
        %s345 = ssub.s32 %s28, 1
        %s346 = sand.u32 %s41, 1
        %s347 = scalar_lea.sflag [#allocation3], %s346
        %s348 = sand.u32 %s41, 1
        %s349 = smul.addr %s348, 32
        %s350 = scalar_lea.vmem [#allocation2], %s349
        // Predicated region
        $region41: #{tpu_custom_call.1} parent=39 // pred_check
          %p351 = pneg %p54
        $region42: #{tpu_custom_call.1} parent=39 // pred_check_branch
          %353 = sbr.rel (%p351) target = $region44
        $region43: #{tpu_custom_call.1} parent=39 // pred_region
          %355 = dma.done %s347, 512
        $region44: #{tpu_custom_call.1} parent=39 // pred_fallthru
          _
        %s356 = sand.u32 %s33, 1
        %s357 = scalar_lea.sflag [#allocation6], %s356
        %s358 = sand.u32 %s67, 1
        %s359 = smul.addr %s358, 32
        %s360 = scalar_lea.vmem [#allocation5], %s359
        // Predicated region
        $region45: #{tpu_custom_call.1} parent=39 // pred_check
          %p361 = pneg %p80
        $region46: #{tpu_custom_call.1} parent=39 // pred_check_branch
          %363 = sbr.rel (%p361) target = $region48
        $region47: #{tpu_custom_call.1} parent=39 // pred_region
          %365 = dma.done %s357, 512
        $region48: #{tpu_custom_call.1} parent=39 // pred_fallthru
          _
        %s366 = sand.u32 %s33, 1
        %s367 = scalar_lea.sflag [#allocation6], %s366
        %s368 = sand.u32 %s93, 1
        %s369 = smul.addr %s368, 32
        %s370 = scalar_lea.vmem [#allocation7], %s369
        // Predicated region
        $region49: #{tpu_custom_call.1} parent=39 // pred_check
          %p371 = pneg %p106
        $region50: #{tpu_custom_call.1} parent=39 // pred_check_branch
          %373 = sbr.rel (%p371) target = $region52
        $region51: #{tpu_custom_call.1} parent=39 // pred_region
          %375 = dma.done %s367, 512
        $region52: #{tpu_custom_call.1} parent=39 // pred_fallthru
          _
        %s376 = sand.u32 %s33, 1
        %s377 = scalar_lea.sflag [#allocation9], %s376
        %s378 = sand.u32 %s119, 1
        %s379 = smul.addr %s378, 8
        %s380 = scalar_lea.vmem [#allocation8], %s379
        // Predicated region
        $region53: #{tpu_custom_call.1} parent=39 // pred_check
          %p381 = pneg %p132
        $region54: #{tpu_custom_call.1} parent=39 // pred_check_branch
          %383 = sbr.rel (%p381) target = $region56
        $region55: #{tpu_custom_call.1} parent=39 // pred_region
          %385 = dma.done %s377, 128
        $region56: #{tpu_custom_call.1} parent=39 // pred_fallthru
          _
        %s386 = sand.u32 %s33, 1
        %s387 = scalar_lea.sflag [#allocation9], %s386
        %s388 = sand.u32 %s145, 1
        %s389 = smul.addr %s388, 32
        %s390 = scalar_lea.vmem [#allocation10], %s389
        // Predicated region
        $region57: #{tpu_custom_call.1} parent=39 // pred_check
          %p391 = pneg %p158
        $region58: #{tpu_custom_call.1} parent=39 // pred_check_branch
          %393 = sbr.rel (%p391) target = $region60
        $region59: #{tpu_custom_call.1} parent=39 // pred_region
          %395 = dma.done %s387, 512
        $region60: #{tpu_custom_call.1} parent=39 // pred_fallthru
          _
        %s396 = sand.u32 %s41, 1
        %s397 = scalar_lea.sflag [#allocation3], %s396
        %s398 = sand.u32 %s41, 1
        %s399 = smul.addr %s398, 32
        %s400 = scalar_lea.vmem [#allocation2], %s399
        %p401 = pneg %p54
        %p402 = pneg %p51
        %s403 = sand.u32 %s33, 1
        %s404 = scalar_lea.sflag [#allocation6], %s403
        %s405 = sand.u32 %s67, 1
        %s406 = smul.addr %s405, 32
        %s407 = scalar_lea.vmem [#allocation5], %s406
        %p408 = pneg %p80
        %p409 = pneg %p77
        %s410 = sand.u32 %s33, 1
        %s411 = scalar_lea.sflag [#allocation6], %s410
        %s412 = sand.u32 %s93, 1
        %s413 = smul.addr %s412, 32
        %s414 = scalar_lea.vmem [#allocation7], %s413
        %p415 = pneg %p106
        %p416 = pneg %p103
        %s417 = sand.u32 %s33, 1
        %s418 = scalar_lea.sflag [#allocation9], %s417
        %s419 = sand.u32 %s119, 1
        %s420 = smul.addr %s419, 8
        %s421 = scalar_lea.vmem [#allocation8], %s420
        %p422 = pneg %p132
        %p423 = pneg %p129
        %s424 = sand.u32 %s33, 1
        %s425 = scalar_lea.sflag [#allocation9], %s424
        %s426 = sand.u32 %s145, 1
        %s427 = smul.addr %s426, 32
        %s428 = scalar_lea.vmem [#allocation10], %s427
        %p429 = pneg %p158
        %p430 = pneg %p155
        %p431 = pneg %p184
        %p432 = pneg %p181
        %s433 = sand.u32 %s171, 1
        %s434 = scalar_lea.sflag [#allocation4], %s433
        %s435 = sand.u32 %s171, 1
        %s436 = smul.addr %s435, 32
        %s437 = scalar_lea.vmem [#allocation11], %s436
        %p438 = pneg %p210
        %p439 = pneg %p207
        %s440 = sand.u32 %s197, 1
        %s441 = scalar_lea.sflag [#allocation13], %s440
        %s442 = sand.u32 %s197, 1
        %s443 = smul.addr %s442, 32
        %s444 = scalar_lea.vmem [#allocation12], %s443
        %s445 = smul.u32 4, %s33
        %s446 = smul.u32 4, %s33
        %s447 = smul.u32 4, %s33
        %s448 = smul.u32 4, %s33
        %s449 = smul.u32 4, %s33
        %s450 = smul.u32 4, %s33
        %s451 = smul.u32 4, %s33
        %v454 = vld [vmem:[%s350] sm:$0xff]
        %v455 = vld [vmem:[%s350 + $0x8] sm:$0xff]
        %v456 = vld [vmem:[%s350 + $0x10] sm:$0xff]
        %v457 = vld [vmem:[%s350 + $0x18] sm:$0xff]
        %v458 = vld [vmem:[%s360] sm:$0xff]
        %v459 = vld [vmem:[%s360 + $0x8] sm:$0xff]
        %v460 = vld [vmem:[%s360 + $0x10] sm:$0xff]
        %v461 = vld [vmem:[%s360 + $0x18] sm:$0xff]
        %v462 = vld [vmem:[%s370] sm:$0xff]
        %v463 = vld [vmem:[%s370 + $0x8] sm:$0xff]
        %v464 = vld [vmem:[%s370 + $0x10] sm:$0xff]
        %v465 = vld [vmem:[%s370 + $0x18] sm:$0xff]
        %vm466 = vcmask 261120
        %v468 = vsel %vm466, %v454, 0
        %v471 = vsel %vm466, %v458, 0
        %473 = vmatpush.xpose.msra.mxu0 0.0
        %474 = vmatpush.xpose.msra.mxu0 0.0
        %475 = vmatpush.xpose.msra.mxu0 0.0
        %476 = vmatpush.xpose.msra.mxu0 0.0
        %477 = vmatpush.xpose.msra.mxu0 0.0
        %478 = vmatpush.xpose.msra.mxu0 0.0
        %479 = vmatpush.xpose.msra.mxu0 0.0
        %480 = vmatpush.xpose.msra.mxu0 0.0
        %481 = vmatpush.xpose.msra.mxu0 0.0
        %482 = vmatpush.xpose.msra.mxu0 0.0
        %483 = vmatpush.xpose.msra.mxu0 0.0
        %484 = vmatpush.xpose.msra.mxu0 0.0
        %485 = vmatpush.xpose.msra.mxu0 0.0
        %486 = vmatpush.xpose.msra.mxu0 0.0
        %487 = vmatpush.xpose.msra.mxu0 0.0
        %488 = vmatpush.xpose.msra.mxu0 %v471
        %489 = vmatmul.f32.gmra.mxu0 %v468
        %v490 = vpop.f32.mrf.mxu0
        %v491 = vadd.f32 0.0, %v490
        %492 = vdwg.mxu0
        %v494 = vsel %vm466, %v455, 0
        %v497 = vsel %vm466, %v459, 0
        %499 = vmatpush.xpose.msra.mxu0 0.0
        %500 = vmatpush.xpose.msra.mxu0 0.0
        %501 = vmatpush.xpose.msra.mxu0 0.0
        %502 = vmatpush.xpose.msra.mxu0 0.0
        %503 = vmatpush.xpose.msra.mxu0 0.0
        %504 = vmatpush.xpose.msra.mxu0 0.0
        %505 = vmatpush.xpose.msra.mxu0 0.0
        %506 = vmatpush.xpose.msra.mxu0 0.0
        %507 = vmatpush.xpose.msra.mxu0 0.0
        %508 = vmatpush.xpose.msra.mxu0 0.0
        %509 = vmatpush.xpose.msra.mxu0 0.0
        %510 = vmatpush.xpose.msra.mxu0 0.0
        %511 = vmatpush.xpose.msra.mxu0 0.0
        %512 = vmatpush.xpose.msra.mxu0 0.0
        %513 = vmatpush.xpose.msra.mxu0 0.0
        %514 = vmatpush.xpose.msra.mxu0 %v497
        %515 = vmatmul.f32.gmra.mxu0 %v494
        %v516 = vpop.f32.mrf.mxu0
        %v517 = vadd.f32 0.0, %v516
        %518 = vdwg.mxu0
        %v520 = vsel %vm466, %v456, 0
        %v523 = vsel %vm466, %v460, 0
        %525 = vmatpush.xpose.msra.mxu0 0.0
        %526 = vmatpush.xpose.msra.mxu0 0.0
        %527 = vmatpush.xpose.msra.mxu0 0.0
        %528 = vmatpush.xpose.msra.mxu0 0.0
        %529 = vmatpush.xpose.msra.mxu0 0.0
        %530 = vmatpush.xpose.msra.mxu0 0.0
        %531 = vmatpush.xpose.msra.mxu0 0.0
        %532 = vmatpush.xpose.msra.mxu0 0.0
        %533 = vmatpush.xpose.msra.mxu0 0.0
        %534 = vmatpush.xpose.msra.mxu0 0.0
        %535 = vmatpush.xpose.msra.mxu0 0.0
        %536 = vmatpush.xpose.msra.mxu0 0.0
        %537 = vmatpush.xpose.msra.mxu0 0.0
        %538 = vmatpush.xpose.msra.mxu0 0.0
        %539 = vmatpush.xpose.msra.mxu0 0.0
        %540 = vmatpush.xpose.msra.mxu0 %v523
        %541 = vmatmul.f32.gmra.mxu0 %v520
        %v542 = vpop.f32.mrf.mxu0
        %v543 = vadd.f32 0.0, %v542
        %544 = vdwg.mxu0
        %v546 = vsel %vm466, %v457, 0
        %v549 = vsel %vm466, %v461, 0
        %551 = vmatpush.xpose.msra.mxu0 0.0
        %552 = vmatpush.xpose.msra.mxu0 0.0
        %553 = vmatpush.xpose.msra.mxu0 0.0
        %554 = vmatpush.xpose.msra.mxu0 0.0
        %555 = vmatpush.xpose.msra.mxu0 0.0
        %556 = vmatpush.xpose.msra.mxu0 0.0
        %557 = vmatpush.xpose.msra.mxu0 0.0
        %558 = vmatpush.xpose.msra.mxu0 0.0
        %559 = vmatpush.xpose.msra.mxu0 0.0
        %560 = vmatpush.xpose.msra.mxu0 0.0
        %561 = vmatpush.xpose.msra.mxu0 0.0
        %562 = vmatpush.xpose.msra.mxu0 0.0
        %563 = vmatpush.xpose.msra.mxu0 0.0
        %564 = vmatpush.xpose.msra.mxu0 0.0
        %565 = vmatpush.xpose.msra.mxu0 0.0
        %566 = vmatpush.xpose.msra.mxu0 %v549
        %567 = vmatmul.f32.gmra.mxu0 %v546
        %v568 = vpop.f32.mrf.mxu0
        %v569 = vadd.f32 0.0, %v568
        %570 = vdwg.mxu0
        %v571 = vmul.f32 %v491, 0.17677669
        %v572 = vmul.f32 %v517, 0.17677669
        %v573 = vmul.f32 %v543, 0.17677669
        %v574 = vmul.f32 %v569, 0.17677669
        %v575 = vld [vmem:[%s390] sm:$0xff]
        %v576 = vld [vmem:[%s390 + $0x8] sm:$0xff]
        %v577 = vld [vmem:[%s390 + $0x10] sm:$0xff]
        %v578 = vld [vmem:[%s390 + $0x18] sm:$0xff]
        %v579 = vadd.f32 %v571, %v575
        %v580 = vadd.f32 %v572, %v576
        %v581 = vadd.f32 %v573, %v577
        %v582 = vadd.f32 %v574, %v578
        %v583 = vld [vmem:[%s380] sm:$0x3]
        %v584 = vld [vmem:[%s380 + $0x2] sm:$0x3]
        %v585 = vld [vmem:[%s380 + $0x4] sm:$0x3]
        %v586 = vld [vmem:[%s380 + $0x6] sm:$0x3]
        %vm587 = vnez %v583
        %vm588 = vnez %v584
        %vm589 = vnez %v585
        %vm590 = vnez %v586
        %v591 = vsel %vm587, 16843009, 0
        %v592 = vsel %vm588, 16843009, 0
        %v593 = vsel %vm589, 16843009, 0
        %v594 = vsel %vm590, 16843009, 0
        %v595 = vunpack.c.0.s8 %v591
        %v596 = vunpack.c.0.s8 %v592
        %v597 = vunpack.c.0.s8 %v593
        %v598 = vunpack.c.0.s8 %v594
        %vm599 = vcmp.ne.s32.totalorder %v595, 0
        %vm600 = vcmp.ne.s32.totalorder %v596, 0
        %vm601 = vcmp.ne.s32.totalorder %v597, 0
        %vm602 = vcmp.ne.s32.totalorder %v598, 0
        %v603 = vsel %vm599, -1e+09, %v579
        %v604 = vsel %vm600, -1e+09, %v580
        %v605 = vsel %vm601, -1e+09, %v581
        %v606 = vsel %vm602, -1e+09, %v582
        %vm607 = vcmask 64512
        %608 = vst.msk [vmem:[%s444] sm:$0xff] %vm607, %v603
        %609 = vst.msk [vmem:[%s444 + $0x8] sm:$0xff] %vm607, %v604
        %610 = vst.msk [vmem:[%s444 + $0x10] sm:$0xff] %vm607, %v605
        %611 = vst.msk [vmem:[%s444 + $0x18] sm:$0xff] %vm607, %v606
        %v612 = vsel %vm607, %v603, -inf
        %613 = vmax.xlane.f32.xlu0 %v612
        %v614 = vpop.xlane.xlu0 %613
        %v615 = vsel %vm607, %v604, -inf
        %616 = vmax.xlane.f32.xlu0 %v615
        %v617 = vpop.xlane.xlu0 %616
        %v618 = vsel %vm607, %v605, -inf
        %619 = vmax.xlane.f32.xlu0 %v618
        %v620 = vpop.xlane.xlu0 %619
        %v621 = vsel %vm607, %v606, -inf
        %622 = vmax.xlane.f32.xlu0 %v621
        %v623 = vpop.xlane.xlu0 %622
        %v624 = vsub.f32 %v603, %v614
        %v625 = vsub.f32 %v604, %v617
        %v626 = vsub.f32 %v605, %v620
        %v627 = vsub.f32 %v606, %v623
        %v628 = vmul.f32 %v624, 1.442695
        %v629 = vpow.pop %v628
        %v630 = vmul.f32 %v625, 1.442695
        %v631 = vpow.pop %v630
        %v632 = vmul.f32 %v626, 1.442695
        %v633 = vpow.pop %v632
        %v634 = vmul.f32 %v627, 1.442695
        %v635 = vpow.pop %v634
        %v636 = vsel %vm607, %v629, 0.0
        %637 = vadd.xlane.f32.xlu0 %v636
        %v638 = vpop.xlane.xlu0 %637
        %v639 = vsel %vm607, %v631, 0.0
        %640 = vadd.xlane.f32.xlu0 %v639
        %v641 = vpop.xlane.xlu0 %640
        %v642 = vsel %vm607, %v633, 0.0
        %643 = vadd.xlane.f32.xlu0 %v642
        %v644 = vpop.xlane.xlu0 %643
        %v645 = vsel %vm607, %v635, 0.0
        %646 = vadd.xlane.f32.xlu0 %v645
        %v647 = vpop.xlane.xlu0 %646
        %v648 = vrcp.pop %v638
        %v649 = vrcp.pop %v641
        %v650 = vrcp.pop %v644
        %v651 = vrcp.pop %v647
        %v652 = vmul.f32 %v629, %v648
        %v653 = vmul.f32 %v631, %v649
        %v654 = vmul.f32 %v633, %v650
        %v655 = vmul.f32 %v635, %v651
        %v657 = vsel %vm607, %v652, 0
        %659 = vmatpush.msra.mxu0 0.0
        %660 = vmatpush.msra.mxu0 0.0
        %661 = vmatpush.msra.mxu0 0.0
        %662 = vmatpush.msra.mxu0 0.0
        %663 = vmatpush.msra.mxu0 0.0
        %664 = vmatpush.msra.mxu0 0.0
        %665 = vmatpush.msra.mxu0 0.0
        %666 = vmatpush.msra.mxu0 0.0
        %667 = vmatpush.msra.mxu0 0.0
        %668 = vmatpush.msra.mxu0 0.0
        %669 = vmatpush.msra.mxu0 0.0
        %670 = vmatpush.msra.mxu0 0.0
        %671 = vmatpush.msra.mxu0 0.0
        %672 = vmatpush.msra.mxu0 0.0
        %673 = vmatpush.msra.mxu0 0.0
        %674 = vmatpush.msra.mxu0 %v462
        %675 = vmatmul.f32.gmra.mxu0 %v657
        %v676 = vpop.f32.mrf.mxu0
        %v677 = vadd.f32 0.0, %v676
        %678 = vdwg.mxu0
        %v680 = vsel %vm607, %v653, 0
        %682 = vmatpush.msra.mxu0 0.0
        %683 = vmatpush.msra.mxu0 0.0
        %684 = vmatpush.msra.mxu0 0.0
        %685 = vmatpush.msra.mxu0 0.0
        %686 = vmatpush.msra.mxu0 0.0
        %687 = vmatpush.msra.mxu0 0.0
        %688 = vmatpush.msra.mxu0 0.0
        %689 = vmatpush.msra.mxu0 0.0
        %690 = vmatpush.msra.mxu0 0.0
        %691 = vmatpush.msra.mxu0 0.0
        %692 = vmatpush.msra.mxu0 0.0
        %693 = vmatpush.msra.mxu0 0.0
        %694 = vmatpush.msra.mxu0 0.0
        %695 = vmatpush.msra.mxu0 0.0
        %696 = vmatpush.msra.mxu0 0.0
        %697 = vmatpush.msra.mxu0 %v463
        %698 = vmatmul.f32.gmra.mxu0 %v680
        %v699 = vpop.f32.mrf.mxu0
        %v700 = vadd.f32 0.0, %v699
        %701 = vdwg.mxu0
        %v703 = vsel %vm607, %v654, 0
        %705 = vmatpush.msra.mxu0 0.0
        %706 = vmatpush.msra.mxu0 0.0
        %707 = vmatpush.msra.mxu0 0.0
        %708 = vmatpush.msra.mxu0 0.0
        %709 = vmatpush.msra.mxu0 0.0
        %710 = vmatpush.msra.mxu0 0.0
        %711 = vmatpush.msra.mxu0 0.0
        %712 = vmatpush.msra.mxu0 0.0
        %713 = vmatpush.msra.mxu0 0.0
        %714 = vmatpush.msra.mxu0 0.0
        %715 = vmatpush.msra.mxu0 0.0
        %716 = vmatpush.msra.mxu0 0.0
        %717 = vmatpush.msra.mxu0 0.0
        %718 = vmatpush.msra.mxu0 0.0
        %719 = vmatpush.msra.mxu0 0.0
        %720 = vmatpush.msra.mxu0 %v464
        %721 = vmatmul.f32.gmra.mxu0 %v703
        %v722 = vpop.f32.mrf.mxu0
        %v723 = vadd.f32 0.0, %v722
        %724 = vdwg.mxu0
        %v726 = vsel %vm607, %v655, 0
        %728 = vmatpush.msra.mxu0 0.0
        %729 = vmatpush.msra.mxu0 0.0
        %730 = vmatpush.msra.mxu0 0.0
        %731 = vmatpush.msra.mxu0 0.0
        %732 = vmatpush.msra.mxu0 0.0
        %733 = vmatpush.msra.mxu0 0.0
        %734 = vmatpush.msra.mxu0 0.0
        %735 = vmatpush.msra.mxu0 0.0
        %736 = vmatpush.msra.mxu0 0.0
        %737 = vmatpush.msra.mxu0 0.0
        %738 = vmatpush.msra.mxu0 0.0
        %739 = vmatpush.msra.mxu0 0.0
        %740 = vmatpush.msra.mxu0 0.0
        %741 = vmatpush.msra.mxu0 0.0
        %742 = vmatpush.msra.mxu0 0.0
        %743 = vmatpush.msra.mxu0 %v465
        %744 = vmatmul.f32.gmra.mxu0 %v726
        %v745 = vpop.f32.mrf.mxu0
        %v746 = vadd.f32 0.0, %v745
        %747 = vdwg.mxu0
        %748 = vst.msk [vmem:[%s437] sm:$0xff] %vm466, %v677
        %749 = vst.msk [vmem:[%s437 + $0x8] sm:$0xff] %vm466, %v700
        %750 = vst.msk [vmem:[%s437 + $0x10] sm:$0xff] %vm466, %v723
        %751 = vst.msk [vmem:[%s437 + $0x18] sm:$0xff] %vm466, %v746
        %s752 = sand.u32 %s171, 1
        %s753 = scalar_lea.sflag [#allocation4], %s752
        %s754 = sand.u32 %s171, 1
        %s755 = smul.addr %s754, 32
        %s756 = scalar_lea.vmem [#allocation11], %s755
        %s757 = sand.u32 %s197, 1
        %s758 = scalar_lea.sflag [#allocation13], %s757
        %s759 = sand.u32 %s197, 1
        %s760 = smul.addr %s759, 32
        %s761 = scalar_lea.vmem [#allocation12], %s760
        // Predicated region
        $region61: #{tpu_custom_call.1} parent=39 // pred_check
          %p762 = pneg %p181
        $region62: #{tpu_custom_call.1} parent=39 // pred_check_branch
          %764 = sbr.rel (%p762) target = $region64
        $region63: #{tpu_custom_call.1} parent=39 // pred_region
          %s765 = smul.u32 4, %s33
          %767 = vsyncadd %s753, 0
          %s768 = smul.addr %s765, 8
          %s769 = scalar_lea.hbm %s5, %s768
          %s770 = sshll.u32 %s756, 4
          %s771 = int_to_ptr.vmem [resolvable:$true] %s770
          %s772 = sshll.u32 %s769, 4
          %s773 = int_to_ptr.hbm [resolvable:$true] %s772
          %778 = dma.vmem_to_hbm [thread:$0]  %s771, 512, %s773, %s753, 128, 128, 8
        $region64: #{tpu_custom_call.1} parent=39 // pred_fallthru
          _
        // Predicated region
        $region65: #{tpu_custom_call.1} parent=39 // pred_check
          %p779 = pneg %p207
        $region66: #{tpu_custom_call.1} parent=39 // pred_check_branch
          %781 = sbr.rel (%p779) target = $region68
        $region67: #{tpu_custom_call.1} parent=39 // pred_region
          %s782 = smul.u32 4, %s33
          %784 = vsyncadd %s758, 0
          %s785 = smul.addr %s782, 8
          %s786 = scalar_lea.hbm %s6, %s785
          %s787 = sshll.u32 %s761, 4
          %s788 = int_to_ptr.vmem [resolvable:$true] %s787
          %s789 = sshll.u32 %s786, 4
          %s790 = int_to_ptr.hbm [resolvable:$true] %s789
          %795 = dma.vmem_to_hbm [thread:$0]  %s788, 512, %s790, %s758, 128, 128, 8
        $region68: #{tpu_custom_call.1} parent=39 // pred_fallthru
          _
      $region40: #{tpu_custom_call.1} parent=5 // pred_fallthru
        _
      %p796 = scmp.le.s32.totalorder 2, %s28
      // Predicated region
      $region69: #{tpu_custom_call.1} parent=5 // pred_check
        %p797 = pneg %p796
      $region70: #{tpu_custom_call.1} parent=5 // pred_check_branch
        %799 = sbr.rel (%p797) target = $region72
      $region71: #{tpu_custom_call.1} parent=5 // pred_region
        %s800 = ssub.s32 %s28, 2
        // Predicated region
        $region73: #{tpu_custom_call.1} parent=71 // pred_check
          %p801 = pneg %p187
        $region74: #{tpu_custom_call.1} parent=71 // pred_check_branch
          %803 = sbr.rel (%p801) target = $region76
        $region75: #{tpu_custom_call.1} parent=71 // pred_region
          %s804 = sand.u32 %s172, 1
          %s805 = scalar_lea.sflag [#allocation4], %s804
          %s806 = sand.u32 %s172, 1
          %s807 = smul.addr %s806, 32
          %s808 = scalar_lea.vmem [#allocation11], %s807
          %810 = dma.done %s805, 512
        $region76: #{tpu_custom_call.1} parent=71 // pred_fallthru
          _
        // Predicated region
        $region77: #{tpu_custom_call.1} parent=71 // pred_check
          %p811 = pneg %p213
        $region78: #{tpu_custom_call.1} parent=71 // pred_check_branch
          %813 = sbr.rel (%p811) target = $region80
        $region79: #{tpu_custom_call.1} parent=71 // pred_region
          %s814 = sand.u32 %s198, 1
          %s815 = scalar_lea.sflag [#allocation13], %s814
          %s816 = sand.u32 %s198, 1
          %s817 = smul.addr %s816, 32
          %s818 = scalar_lea.vmem [#allocation12], %s817
          %820 = dma.done %s815, 512
        $region80: #{tpu_custom_call.1} parent=71 // pred_fallthru
          _
      $region72: #{tpu_custom_call.1} parent=5 // pred_fallthru
        _
    $region6: #{tpu_custom_call.1} parent=1 // loop_footer
      %s32 = sadd.s32 1, %s28
    $region7: #{tpu_custom_call.1} parent=1 // loop_footer_branch
      %27 = sbr.rel target = $region3
    $region8: #{tpu_custom_call.1} parent=1 // loop_exit
      _
    %821 = vsyncpa [#allocation3], 1
    %s822 = scalar_lea.sflag [#allocation3], 1
    %823 = vsyncpa %s822, 1
    %824 = vsyncpa [#allocation6], 1
    %s825 = scalar_lea.sflag [#allocation6], 1
    %826 = vsyncpa %s825, 1
    %827 = vsyncpa [#allocation9], 1
    %s828 = scalar_lea.sflag [#allocation9], 1
    %829 = vsyncpa %s828, 1
    %830 = vsyncpa [#allocation4], 1
    %s831 = scalar_lea.sflag [#allocation4], 1
    %832 = vsyncpa %s831, 1
    %833 = vsyncpa [#allocation13], 1
    %s834 = scalar_lea.sflag [#allocation13], 1
    %835 = vsyncpa %s834, 1

</llo_original>
